<compile_context>
chip_gen: v7x
topology: tpu7x:2x2x1
jax: 0.10.0
libtpu: 0.0.40
codegen_flags: <defaults>
</compile_context>

<pallas_src>
import functools

import jax
import jax.numpy as jnp
from jax import lax
from jax.experimental import pallas as pl
from jax.experimental.pallas import tpu as pltpu

S2CELL_DIM = 64
OUTPUT_DIM = 768
_EPS = 1e-8      # torch.nn.functional.cosine_similarity default eps
_NEG = -1e30     # finite mask value for padded cell columns (cos-sim is in [-1, 1])
_N_PAR = 2       # leading "parallel" grid axis -> both TensorCores on v7x


def _round_up(x, m):
    return ((x + m - 1) // m) * m


def _dual_encoder_kernel(cells_ref, g_ref, v2_ref, u_ref, beta_ref, tgt_ref, s_ref,
                         score_ref, lse_ref, pick_ref,
                         m_ref, l_ref, pk_ref,
                         *, num_cells):
    pid = pl.program_id(0)                      # parallel cell-slice (megacore)
    cid = pl.program_id(1)                      # sequential tile within the slice
    bsz_p, tile_c = score_ref.shape

    # --- per-slice init of the online-softmax state ---------------------------
    @pl.when(cid == 0)
    def _():
        m_ref[...] = jnp.full_like(m_ref, -jnp.inf)
        l_ref[...] = jnp.zeros_like(l_ref)
        pk_ref[...] = jnp.zeros_like(pk_ref)

    cells = cells_ref[...]                                               # [TC,64] bf16

    # --- ||cell_j||^2 = cells_j G cells_j^T + (2 W b)·cells_j + b·b  ----------
    # Emitted directly as a lane-major row [1,TC] via an MXU ones-reduction so
    # it broadcasts over the [B,TC] score with no transpose.
    cg = jnp.dot(cells, g_ref[...], preferred_element_type=jnp.float32)  # [TC,64] f32
    d = (cg + v2_ref[...]) * cells.astype(jnp.float32)                   # [TC,64] f32
    ones = jnp.ones((1, S2CELL_DIM), dtype=jnp.bfloat16)
    nsq = lax.dot_general(ones, d.astype(jnp.bfloat16),
                          (((1,), (1,)), ((), ())),
                          preferred_element_type=jnp.float32) + s_ref[0, 0]   # [1,TC]
    inv_norm = lax.rsqrt(jnp.maximum(nsq, jnp.float32(_EPS * _EPS)))     # [1,TC]

    # --- cos(text_i, cell_j) = (u_i · cells_j + beta_i) * inv_norm_j ----------
    num = lax.dot_general(u_ref[...], cells, (((1,), (1,)), ((), ())),
                          preferred_element_type=jnp.float32) + beta_ref[...]  # [B,TC]
    score = num * inv_norm
    score_ref[...] = score                                               # lane-dense store

    # --- online logsumexp + picked-target logit over this slice's tiles -------
    col0 = (pid * pl.num_programs(1) + cid) * tile_c
    cols = col0 + lax.broadcasted_iota(jnp.int32, (bsz_p, tile_c), 1)
    s_masked = jnp.where(cols < num_cells, score, jnp.float32(_NEG))     # mask padding
    m_prev = m_ref[...]
    m_new = jnp.maximum(m_prev, jnp.max(s_masked, axis=-1, keepdims=True))
    alpha = jnp.exp(m_prev - m_new)
    l_ref[...] = alpha * l_ref[...] + jnp.sum(jnp.exp(s_masked - m_new),
                                              axis=-1, keepdims=True)
    m_ref[...] = m_new
    pk_ref[...] += jnp.sum(jnp.where(cols == tgt_ref[...], score, 0.0),
                           axis=-1, keepdims=True)

    # --- finalize: emit this slice's partial lse and picked logit -------------
    @pl.when(cid == pl.num_programs(1) - 1)
    def _():
        lse_ref[...] = m_ref[...] + jnp.log(l_ref[...])
        pick_ref[...] = pk_ref[...]


def dual_encoder_forward(encoded_text, target, all_cells, w, b):
    """Returns (loss, score) matching DualEncoder.forward semantics.

    encoded_text: [B, 768] f32 (precomputed BERT CLS embedding)
    target:       [B] int
    all_cells:    [C, 64] f32
    w:            [64, 768] f32 (cellid_main Linear weight, input-major)
    b:            [768] f32
    """
    bsz = encoded_text.shape[0]
    num_cells = all_cells.shape[0]

    # ---- generation-aware sizing (v7x: 64 MiB VMEM, v5e/v6e: 128 MiB) --------
    try:
        vmem_cap = pltpu.get_tpu_info().vmem_capacity_bytes
    except Exception:
        vmem_cap = 64 * 1024 * 1024                       # conservative fallback
    if vmem_cap >= 100 * 1024 * 1024:                     # v5e / v6e
        tile_cap, vmem_limit = 8192, 100 * 1024 * 1024
    else:                                                 # v7x
        tile_cap, vmem_limit = 4096, 52 * 1024 * 1024
    # With the W.W^T refactor the per-cell VMEM cost is ~1.25 KiB, so these caps
    # leave large headroom (<= ~12 MiB of tile-dependent VMEM).

    # ---- grid: (parallel cell-slices, sequential tiles per slice) ------------
    cells_per_slice = -(-num_cells // _N_PAR)
    tiles_per_slice = max(1, -(-cells_per_slice // tile_cap))
    tile_c = _round_up(-(-cells_per_slice // tiles_per_slice), 128)
    c_pad = _N_PAR * tiles_per_slice * tile_c
    b_pad = _round_up(max(bsz, 8), 8)                     # full f32 sublane tile

    f32 = jnp.float32
    w = w.astype(f32)
    b = b.astype(f32)
    text = encoded_text.astype(f32)

    # ---- tiny f32 wrapper precompute: fold the 768-dim out of the kernel -----
    textn = text / jnp.maximum(jnp.linalg.norm(text, axis=-1, keepdims=True), _EPS)
    u = textn @ w.T                                       # [B, 64]
    beta = textn @ b                                      # [B]
    g = w @ w.T                                           # [64, 64]
    v2 = (2.0 * (w @ b)).reshape(1, S2CELL_DIM)           # [1, 64]
    s = (b @ b).reshape(1, 1)                             # [1, 1]

    # Padding: cell rows -> zeros (their score columns are masked / sliced off);
    # batch rows -> zeros (excluded from the loss below).
    cells_p = jnp.zeros((c_pad, S2CELL_DIM), jnp.bfloat16).at[:num_cells].set(
        all_cells.astype(jnp.bfloat16))
    u_p = jnp.zeros((b_pad, S2CELL_DIM), jnp.bfloat16).at[:bsz].set(
        u.astype(jnp.bfloat16))
    beta_p = jnp.zeros((b_pad, 1), f32).at[:bsz, 0].set(beta)
    tgt_p = jnp.full((b_pad, 1), -1, jnp.int32).at[:bsz, 0].set(
        target.astype(jnp.int32))

    kernel = functools.partial(_dual_encoder_kernel, num_cells=num_cells)

    grid_spec = pltpu.PrefetchScalarGridSpec(
        num_scalar_prefetch=0,
        grid=(_N_PAR, tiles_per_slice),
        in_specs=[
            pl.BlockSpec((tile_c, S2CELL_DIM),
                         lambda pi, ci: (pi * tiles_per_slice + ci, 0)),    # cell tile
            pl.BlockSpec((S2CELL_DIM, S2CELL_DIM), lambda pi, ci: (0, 0)),  # G = W W^T
            pl.BlockSpec((1, S2CELL_DIM), lambda pi, ci: (0, 0)),           # 2 W b
            pl.BlockSpec((b_pad, S2CELL_DIM), lambda pi, ci: (0, 0)),       # u = textn W^T
            pl.BlockSpec((b_pad, 1), lambda pi, ci: (0, 0)),                # beta = textn.b
            pl.BlockSpec((b_pad, 1), lambda pi, ci: (0, 0)),                # target indices
            pl.BlockSpec(memory_space=pltpu.MemorySpace.SMEM),              # s = b.b scalar
        ],
        out_specs=(
            pl.BlockSpec((b_pad, tile_c),
                         lambda pi, ci: (0, pi * tiles_per_slice + ci)),    # score tile
            pl.BlockSpec((None, b_pad, 1), lambda pi, ci: (pi, 0, 0)),      # partial lse
            pl.BlockSpec((None, b_pad, 1), lambda pi, ci: (pi, 0, 0)),      # partial picked
        ),
        scratch_shapes=[
            pltpu.VMEM((b_pad, 1), jnp.float32),   # running max
            pltpu.VMEM((b_pad, 1), jnp.float32),   # running exp-sum
            pltpu.VMEM((b_pad, 1), jnp.float32),   # picked target logit
        ],
    )

    score_p, lse_p, pick_p = pl.pallas_call(
        kernel,
        out_shape=(jax.ShapeDtypeStruct((b_pad, c_pad), jnp.float32),
                   jax.ShapeDtypeStruct((_N_PAR, b_pad, 1), jnp.float32),
                   jax.ShapeDtypeStruct((_N_PAR, b_pad, 1), jnp.float32)),
        grid_spec=grid_spec,
        compiler_params=pltpu.CompilerParams(
            dimension_semantics=("parallel", "arbitrary"),
            vmem_limit_bytes=vmem_limit),
    )(cells_p, g.astype(jnp.bfloat16), v2, u_p, beta_p, tgt_p, s)

    # CrossEntropyLoss: mean_b( logsumexp_j(score) - score[b, target_b] ),
    # combining the per-slice online-softmax partials; padded batch rows dropped.
    lse = jax.nn.logsumexp(lse_p[:, :bsz, 0], axis=0)     # [B]
    picked = jnp.sum(pick_p[:, :bsz, 0], axis=0)          # [B]
    loss = jnp.mean(lse - picked)

    return loss, score_p[:bsz, :num_cells]


if __name__ == "__main__":
    key = jax.random.PRNGKey(0)
    k1, k2, k3, k4, k5 = jax.random.split(key, 5)

    B, C = 2, 16  # batch of texts, number of candidate s2 cells

    # Stand-in for bert_model(**text).last_hidden_state[:, 0, :]
    encoded_text = jax.random.normal(k1, (B, OUTPUT_DIM), dtype=jnp.float32)
    all_cells = jax.random.normal(k2, (C, S2CELL_DIM), dtype=jnp.float32)
    target = jax.random.randint(k3, (B,), 0, C, dtype=jnp.int32)

    # Deterministic nn.Linear(64, 768) init: U(-1/sqrt(in), 1/sqrt(in))
    bound = 1.0 / (S2CELL_DIM ** 0.5)
    w = jax.random.uniform(k4, (S2CELL_DIM, OUTPUT_DIM), jnp.float32, -bound, bound)
    b = jax.random.uniform(k5, (OUTPUT_DIM,), jnp.float32, -bound, bound)

    loss, score = dual_encoder_forward(encoded_text, target, all_cells, w, b)
    jax.block_until_ready((loss, score))
    assert score.shape == (B, C) and loss.shape == ()

    # Pure-JAX reference (f32) — loose tolerance since matmul operands are bf16.
    cell_ref = all_cells @ w + b
    tn = encoded_text / jnp.maximum(
        jnp.linalg.norm(encoded_text, axis=-1, keepdims=True), _EPS)
    cn = cell_ref / jnp.maximum(
        jnp.linalg.norm(cell_ref, axis=-1, keepdims=True), _EPS)
    score_ref = tn @ cn.T
    lse_ref = jax.nn.logsumexp(score_ref, axis=-1)
    loss_ref = jnp.mean(lse_ref - score_ref[jnp.arange(B), target])
    assert jnp.allclose(score, score_ref, atol=3e-2), "score mismatch"
    assert jnp.allclose(loss, loss_ref, atol=3e-2), "loss mismatch"

    print("KERNEL_OK")
</pallas_src>

<mosaic_0001>
module attributes {stable_mosaic.version = 11 : i64} {
  func.func @_dual_encoder_kernel(%arg0: i32, %arg1: i32, %arg2: memref<128x64xbf16, #tpu.memory_space<vmem>>, %arg3: memref<64x64xbf16, #tpu.memory_space<vmem>>, %arg4: memref<1x64xf32, #tpu.memory_space<vmem>>, %arg5: memref<8x64xbf16, #tpu.memory_space<vmem>>, %arg6: memref<8x1xf32, #tpu.memory_space<vmem>>, %arg7: memref<8x1xi32, #tpu.memory_space<vmem>>, %arg8: memref<1x1xf32, #tpu.memory_space<smem>>, %arg9: memref<8x128xf32, #tpu.memory_space<vmem>>, %arg10: memref<1x8x1xf32, #tpu.memory_space<vmem>>, %arg11: memref<1x8x1xf32, #tpu.memory_space<vmem>>, %arg12: memref<8x1xf32, #tpu.memory_space<vmem>>, %arg13: memref<8x1xf32, #tpu.memory_space<vmem>>, %arg14: memref<8x1xf32, #tpu.memory_space<vmem>>) attributes {dimension_semantics = [#tpu.dimension_semantics<parallel>, #tpu.dimension_semantics<arbitrary>], iteration_bounds = array<i64: 2, 1>, scalar_prefetch = 0 : i64, scratch_operands = 3 : i64, tpu.core_type = #tpu.core_type<tc>, window_params = [{transform_indices = @transform_0, window_bounds = array<i64: 128, 64>}, {pipeline_mode = #tpu.pipeline_mode<synchronous>, transform_indices = @transform_1, window_bounds = array<i64: 64, 64>}, {pipeline_mode = #tpu.pipeline_mode<synchronous>, transform_indices = @transform_2, window_bounds = array<i64: 1, 64>}, {pipeline_mode = #tpu.pipeline_mode<synchronous>, transform_indices = @transform_3, window_bounds = array<i64: 8, 64>}, {pipeline_mode = #tpu.pipeline_mode<synchronous>, transform_indices = @transform_4, window_bounds = array<i64: 8, 1>}, {pipeline_mode = #tpu.pipeline_mode<synchronous>, transform_indices = @transform_5, window_bounds = array<i64: 8, 1>}, {transform_indices = @transform_6, window_bounds = array<i64: 1, 1>}, {transform_indices = @transform_7, window_bounds = array<i64: 8, 128>}, {transform_indices = @transform_8, window_bounds = array<i64: 1, 8, 1>}, {transform_indices = @transform_9, window_bounds = array<i64: 1, 8, 1>}]} {
    %c0_i32 = arith.constant 0 : i32
    %0 = arith.cmpi eq, %arg1, %c0_i32 : i32
    %1 = arith.extui %0 : i1 to i32
    %c0_i32_0 = arith.constant 0 : i32
    %2 = arith.cmpi ne, %1, %c0_i32_0 : i32
    scf.if %2 {
      %cst_39 = arith.constant 0xFF800000 : f32
      %67 = vector.broadcast %cst_39 : f32 to vector<8x1xf32>
      %c0_40 = arith.constant 0 : index
      %c0_41 = arith.constant 0 : index
      %68 = vector.load %arg12[%c0_40, %c0_41] : memref<8x1xf32, #tpu.memory_space<vmem>>, vector<8x1xf32>
      tpu.vector_store %arg12[%c0_40, %c0_41], %67 {strides = array<i32>} : memref<8x1xf32, #tpu.memory_space<vmem>>, vector<8x1xf32>,
      %cst_42 = arith.constant 0.000000e+00 : f32
      %69 = vector.broadcast %cst_42 : f32 to vector<8x1xf32>
      %c0_43 = arith.constant 0 : index
      %c0_44 = arith.constant 0 : index
      %70 = vector.load %arg13[%c0_43, %c0_44] : memref<8x1xf32, #tpu.memory_space<vmem>>, vector<8x1xf32>
      tpu.vector_store %arg13[%c0_43, %c0_44], %69 {strides = array<i32>} : memref<8x1xf32, #tpu.memory_space<vmem>>, vector<8x1xf32>,
      %cst_45 = arith.constant 0.000000e+00 : f32
      %71 = vector.broadcast %cst_45 : f32 to vector<8x1xf32>
      %c0_46 = arith.constant 0 : index
      %c0_47 = arith.constant 0 : index
      %72 = vector.load %arg14[%c0_46, %c0_47] : memref<8x1xf32, #tpu.memory_space<vmem>>, vector<8x1xf32>
      tpu.vector_store %arg14[%c0_46, %c0_47], %71 {strides = array<i32>} : memref<8x1xf32, #tpu.memory_space<vmem>>, vector<8x1xf32>,
    } else {
    }
    %c0 = arith.constant 0 : index
    %c0_1 = arith.constant 0 : index
    %3 = vector.load %arg2[%c0, %c0_1] : memref<128x64xbf16, #tpu.memory_space<vmem>>, vector<128x64xbf16>
    %c0_2 = arith.constant 0 : index
    %c0_3 = arith.constant 0 : index
    %4 = vector.load %arg3[%c0_2, %c0_3] : memref<64x64xbf16, #tpu.memory_space<vmem>>, vector<64x64xbf16>
    %cst = arith.constant dense<0.000000e+00> : vector<128x64xf32>
    %5 = tpu.matmul %3, %4, %cst {dimension_numbers = #tpu.dot_dimension_numbers<[1], [0], [0], [1], [0, 0, 1, 1], [], []>} : vector<128x64xbf16>, vector<64x64xbf16>, vector<128x64xf32> -> vector<128x64xf32>
    %c0_4 = arith.constant 0 : index
    %c0_5 = arith.constant 0 : index
    %6 = vector.load %arg4[%c0_4, %c0_5] : memref<1x64xf32, #tpu.memory_space<vmem>>, vector<1x64xf32>
    %7 = vector.broadcast %6 : vector<1x64xf32> to vector<128x64xf32>
    %8 = arith.addf %5, %7 : vector<128x64xf32>
    %9 = arith.extf %3 : vector<128x64xbf16> to vector<128x64xf32>
    %10 = arith.mulf %8, %9 : vector<128x64xf32>
    %cst_6 = arith.constant 1.000000e+00 : bf16
    %11 = vector.broadcast %cst_6 : bf16 to vector<1x64xbf16>
    %12 = arith.truncf %10 : vector<128x64xf32> to vector<128x64xbf16>
    %cst_7 = arith.constant dense<0.000000e+00> : vector<1x128xf32>
    %13 = tpu.matmul %11, %12, %cst_7 {dimension_numbers = #tpu.dot_dimension_numbers<[1], [1], [0], [0], [0, 0, 1, 0], [], []>} : vector<1x64xbf16>, vector<128x64xbf16>, vector<1x128xf32> -> vector<1x128xf32>
    %c0_8 = arith.constant 0 : index
    %c0_9 = arith.constant 0 : index
    %14 = memref.load %arg8[%c0_8, %c0_9] : memref<1x1xf32, #tpu.memory_space<smem>>
    %15 = vector.broadcast %14 : f32 to vector<1x128xf32>
    %16 = arith.addf %13, %15 : vector<1x128xf32>
    %cst_10 = arith.constant 1.000000e-16 : f32
    %17 = vector.broadcast %cst_10 : f32 to vector<1x128xf32>
    %18 = arith.maximumf %16, %17 : vector<1x128xf32>
    %19 = math.rsqrt %18 : vector<1x128xf32>
    %c0_11 = arith.constant 0 : index
    %c0_12 = arith.constant 0 : index
    %20 = vector.load %arg5[%c0_11, %c0_12] : memref<8x64xbf16, #tpu.memory_space<vmem>>, vector<8x64xbf16>
    %cst_13 = arith.constant dense<0.000000e+00> : vector<8x128xf32>
    %21 = tpu.matmul %20, %3, %cst_13 {dimension_numbers = #tpu.dot_dimension_numbers<[1], [1], [0], [0], [0, 0, 1, 0], [], []>} : vector<8x64xbf16>, vector<128x64xbf16>, vector<8x128xf32> -> vector<8x128xf32>
    %c0_14 = arith.constant 0 : index
    %c0_15 = arith.constant 0 : index
    %22 = vector.load %arg6[%c0_14, %c0_15] : memref<8x1xf32, #tpu.memory_space<vmem>>, vector<8x1xf32>
    %23 = vector.broadcast %22 : vector<8x1xf32> to vector<8x128xf32>
    %24 = arith.addf %21, %23 : vector<8x128xf32>
    %25 = vector.broadcast %19 : vector<1x128xf32> to vector<8x128xf32>
    %26 = arith.mulf %24, %25 : vector<8x128xf32>
    %c0_16 = arith.constant 0 : index
    %c0_17 = arith.constant 0 : index
    %27 = vector.load %arg9[%c0_16, %c0_17] : memref<8x128xf32, #tpu.memory_space<vmem>>, vector<8x128xf32>
    tpu.vector_store %arg9[%c0_16, %c0_17], %26 {strides = array<i32>} : memref<8x128xf32, #tpu.memory_space<vmem>>, vector<8x128xf32>,
    %c1_i32 = arith.constant 1 : i32
    %28 = arith.muli %arg0, %c1_i32 : i32
    %29 = arith.addi %28, %arg1 : i32
    %c128_i32 = arith.constant 128 : i32
    %30 = arith.muli %29, %c128_i32 : i32
    %31 = tpu.iota {dimensions = array<i32: 1>} : vector<8x128xi32>
    %32 = vector.broadcast %30 : i32 to vector<8x128xi32>
    %33 = arith.addi %32, %31 : vector<8x128xi32>
    %c16_i32 = arith.constant 16 : i32
    %34 = vector.broadcast %c16_i32 : i32 to vector<8x128xi32>
    %35 = arith.cmpi slt, %33, %34 : vector<8x128xi32>
    %cst_18 = arith.constant -1.000000e+30 : f32
    %36 = vector.broadcast %cst_18 : f32 to vector<8x128xf32>
    %37 = arith.select %35, %26, %36 : vector<8x128xi1>, vector<8x128xf32>
    %c0_19 = arith.constant 0 : index
    %c0_20 = arith.constant 0 : index
    %38 = vector.load %arg12[%c0_19, %c0_20] : memref<8x1xf32, #tpu.memory_space<vmem>>, vector<8x1xf32>
    %cst_21 = arith.constant dense<0xFF800000> : vector<8xf32>
    %39 = vector.multi_reduction <maximumf>, %37, %cst_21 [1] : vector<8x128xf32> to vector<8xf32>
    %40 = vector.shape_cast %39 : vector<8xf32> to vector<8x1xf32>
    %41 = arith.maximumf %38, %40 : vector<8x1xf32>
    %42 = arith.subf %38, %41 : vector<8x1xf32>
    %43 = math.exp %42 : vector<8x1xf32>
    %c0_22 = arith.constant 0 : index
    %c0_23 = arith.constant 0 : index
    %44 = vector.load %arg13[%c0_22, %c0_23] : memref<8x1xf32, #tpu.memory_space<vmem>>, vector<8x1xf32>
    %45 = arith.mulf %43, %44 : vector<8x1xf32>
    %46 = vector.broadcast %41 : vector<8x1xf32> to vector<8x128xf32>
    %47 = arith.subf %37, %46 : vector<8x128xf32>
    %48 = math.exp %47 : vector<8x128xf32>
    %cst_24 = arith.constant dense<0.000000e+00> : vector<8xf32>
    %49 = vector.multi_reduction <add>, %48, %cst_24 [1] : vector<8x128xf32> to vector<8xf32>
    %50 = vector.shape_cast %49 : vector<8xf32> to vector<8x1xf32>
    %51 = arith.addf %45, %50 : vector<8x1xf32>
    %c0_25 = arith.constant 0 : index
    %c0_26 = arith.constant 0 : index
    %52 = vector.load %arg13[%c0_25, %c0_26] : memref<8x1xf32, #tpu.memory_space<vmem>>, vector<8x1xf32>
    tpu.vector_store %arg13[%c0_25, %c0_26], %51 {strides = array<i32>} : memref<8x1xf32, #tpu.memory_space<vmem>>, vector<8x1xf32>,
    %c0_27 = arith.constant 0 : index
    %c0_28 = arith.constant 0 : index
    %53 = vector.load %arg12[%c0_27, %c0_28] : memref<8x1xf32, #tpu.memory_space<vmem>>, vector<8x1xf32>
    tpu.vector_store %arg12[%c0_27, %c0_28], %41 {strides = array<i32>} : memref<8x1xf32, #tpu.memory_space<vmem>>, vector<8x1xf32>,
    %c0_29 = arith.constant 0 : index
    %c0_30 = arith.constant 0 : index
    %54 = vector.load %arg14[%c0_29, %c0_30] : memref<8x1xf32, #tpu.memory_space<vmem>>, vector<8x1xf32>
    %c0_31 = arith.constant 0 : index
    %c0_32 = arith.constant 0 : index
    %55 = vector.load %arg7[%c0_31, %c0_32] : memref<8x1xi32, #tpu.memory_space<vmem>>, vector<8x1xi32>
    %56 = vector.broadcast %55 : vector<8x1xi32> to vector<8x128xi32>
    %57 = arith.cmpi eq, %33, %56 : vector<8x128xi32>
    %cst_33 = arith.constant 0.000000e+00 : f32
    %58 = vector.broadcast %cst_33 : f32 to vector<8x128xf32>
    %59 = arith.select %57, %26, %58 : vector<8x128xi1>, vector<8x128xf32>
    %cst_34 = arith.constant dense<0.000000e+00> : vector<8xf32>
    %60 = vector.multi_reduction <add>, %59, %cst_34 [1] : vector<8x128xf32> to vector<8xf32>
    %61 = vector.shape_cast %60 : vector<8xf32> to vector<8x1xf32>
    %62 = arith.addf %54, %61 : vector<8x1xf32>
    %c0_35 = arith.constant 0 : index
    %c0_36 = arith.constant 0 : index
    %63 = vector.load %arg14[%c0_35, %c0_36] : memref<8x1xf32, #tpu.memory_space<vmem>>, vector<8x1xf32>
    tpu.vector_store %arg14[%c0_35, %c0_36], %62 {strides = array<i32>} : memref<8x1xf32, #tpu.memory_space<vmem>>, vector<8x1xf32>,
    %c0_i32_37 = arith.constant 0 : i32
    %64 = arith.cmpi eq, %arg1, %c0_i32_37 : i32
    %65 = arith.extui %64 : i1 to i32
    %c0_i32_38 = arith.constant 0 : i32
    %66 = arith.cmpi ne, %65, %c0_i32_38 : i32
    scf.if %66 {
      %c0_39 = arith.constant 0 : index
      %c0_40 = arith.constant 0 : index
      %67 = vector.load %arg12[%c0_39, %c0_40] : memref<8x1xf32, #tpu.memory_space<vmem>>, vector<8x1xf32>
      %c0_41 = arith.constant 0 : index
      %c0_42 = arith.constant 0 : index
      %68 = vector.load %arg13[%c0_41, %c0_42] : memref<8x1xf32, #tpu.memory_space<vmem>>, vector<8x1xf32>
      %69 = math.log %68 : vector<8x1xf32>
      %70 = arith.addf %67, %69 : vector<8x1xf32>
      %c0_43 = arith.constant 0 : index
      %c0_44 = arith.constant 0 : index
      %c0_45 = arith.constant 0 : index
      %71 = vector.load %arg10[%c0_43, %c0_44, %c0_45] : memref<1x8x1xf32, #tpu.memory_space<vmem>>, vector<1x8x1xf32>
      %72 = vector.shape_cast %71 : vector<1x8x1xf32> to vector<8x1xf32>
      %73 = vector.shape_cast %70 : vector<8x1xf32> to vector<1x8x1xf32>
      tpu.vector_store %arg10[%c0_43, %c0_44, %c0_45], %73 {strides = array<i32>} : memref<1x8x1xf32, #tpu.memory_space<vmem>>, vector<1x8x1xf32>,
      %c0_46 = arith.constant 0 : index
      %c0_47 = arith.constant 0 : index
      %74 = vector.load %arg14[%c0_46, %c0_47] : memref<8x1xf32, #tpu.memory_space<vmem>>, vector<8x1xf32>
      %c0_48 = arith.constant 0 : index
      %c0_49 = arith.constant 0 : index
      %c0_50 = arith.constant 0 : index
      %75 = vector.load %arg11[%c0_48, %c0_49, %c0_50] : memref<1x8x1xf32, #tpu.memory_space<vmem>>, vector<1x8x1xf32>
      %76 = vector.shape_cast %75 : vector<1x8x1xf32> to vector<8x1xf32>
      %77 = vector.shape_cast %74 : vector<8x1xf32> to vector<1x8x1xf32>
      tpu.vector_store %arg11[%c0_48, %c0_49, %c0_50], %77 {strides = array<i32>} : memref<1x8x1xf32, #tpu.memory_space<vmem>>, vector<1x8x1xf32>,
    } else {
    }
    return
  }
  func.func @transform_0(%arg0: i32, %arg1: i32) -> (i32, i32) {
    %c1_i32 = arith.constant 1 : i32
    %0 = arith.muli %arg0, %c1_i32 : i32
    %1 = arith.addi %0, %arg1 : i32
    %c0_i32 = arith.constant 0 : i32
    %c0_i32_0 = arith.constant 0 : i32
    return %1, %c0_i32 : i32, i32
  }
  func.func @transform_1(%arg0: i32, %arg1: i32) -> (i32, i32) {
    %c0_i32 = arith.constant 0 : i32
    %c0_i32_0 = arith.constant 0 : i32
    %c0_i32_1 = arith.constant 0 : i32
    return %c0_i32, %c0_i32_0 : i32, i32
  }
  func.func @transform_2(%arg0: i32, %arg1: i32) -> (i32, i32) {
    %c0_i32 = arith.constant 0 : i32
    %c0_i32_0 = arith.constant 0 : i32
    %c0_i32_1 = arith.constant 0 : i32
    return %c0_i32, %c0_i32_0 : i32, i32
  }
  func.func @transform_3(%arg0: i32, %arg1: i32) -> (i32, i32) {
    %c0_i32 = arith.constant 0 : i32
    %c0_i32_0 = arith.constant 0 : i32
    %c0_i32_1 = arith.constant 0 : i32
    return %c0_i32, %c0_i32_0 : i32, i32
  }
  func.func @transform_4(%arg0: i32, %arg1: i32) -> (i32, i32) {
    %c0_i32 = arith.constant 0 : i32
    %c0_i32_0 = arith.constant 0 : i32
    %c0_i32_1 = arith.constant 0 : i32
    return %c0_i32, %c0_i32_0 : i32, i32
  }
  func.func @transform_5(%arg0: i32, %arg1: i32) -> (i32, i32) {
    %c0_i32 = arith.constant 0 : i32
    %c0_i32_0 = arith.constant 0 : i32
    %c0_i32_1 = arith.constant 0 : i32
    return %c0_i32, %c0_i32_0 : i32, i32
  }
  func.func @transform_6(%arg0: i32, %arg1: i32) -> (i32, i32) {
    %c0_i32 = arith.constant 0 : i32
    %c0_i32_0 = arith.constant 0 : i32
    %c0_i32_1 = arith.constant 0 : i32
    return %c0_i32, %c0_i32_0 : i32, i32
  }
  func.func @transform_7(%arg0: i32, %arg1: i32) -> (i32, i32) {
    %c1_i32 = arith.constant 1 : i32
    %0 = arith.muli %arg0, %c1_i32 : i32
    %1 = arith.addi %0, %arg1 : i32
    %c0_i32 = arith.constant 0 : i32
    %c0_i32_0 = arith.constant 0 : i32
    return %c0_i32, %1 : i32, i32
  }
  func.func @transform_8(%arg0: i32, %arg1: i32) -> (i32, i32, i32) {
    %c0_i32 = arith.constant 0 : i32
    %c0_i32_0 = arith.constant 0 : i32
    %c0_i32_1 = arith.constant 0 : i32
    return %arg0, %c0_i32, %c0_i32_0 : i32, i32, i32
  }
  func.func @transform_9(%arg0: i32, %arg1: i32) -> (i32, i32, i32) {
    %c0_i32 = arith.constant 0 : i32
    %c0_i32_0 = arith.constant 0 : i32
    %c0_i32_1 = arith.constant 0 : i32
    return %arg0, %c0_i32, %c0_i32_0 : i32, i32, i32
  }
}

</mosaic_0001>

<llo_original>
// kernel: tpu_custom_call.1
$region0: #{tpu_custom_call.1}
  #allocation0 [shape = 'u32[]', space=smem, size = 0x4, offset = 0x4, fixed_abs, tag = 'smem constant byte address 0x4 - core index']
  #allocation1 [shape = 'u32[144,128]{1,0:T(1,128)}', space=vmem, size = 0x12000, scoped, tag = 'internal scratch']
  #allocation2 [shape = 'f32[8,1]{1,0:T(8,128)}', space=vmem, size = 0x1000, scoped, tag = 'scratch operand']
  #allocation3 [shape = 'f32[8,1]{1,0:T(8,128)}', space=vmem, size = 0x1000, scoped, tag = 'scratch operand']
  #allocation4 [shape = 'f32[8,1]{1,0:T(8,128)}', space=vmem, size = 0x1000, scoped, tag = 'scratch operand']
  #allocation5 [shape = 'f32[1,1]{1,0:T(1,128)S(6)}', space=smem, size = 0x200, scoped, tag = 'scoped memory for tpu_custom_call.1']
  %s0 = inlined_call_operand.vmem [shape: bf16[256,64], index: 0, kind: input, shape index: {}]
  %s1 = inlined_call_operand.vmem [shape: bf16[64,64], index: 1, kind: input, shape index: {}]
  %s2 = inlined_call_operand.vmem [shape: f32[1,64], index: 2, kind: input, shape index: {}]
  %s3 = inlined_call_operand.vmem [shape: bf16[8,64], index: 3, kind: input, shape index: {}]
  %s4 = inlined_call_operand.vmem [shape: f32[8,1], index: 4, kind: input, shape index: {}]
  %s5 = inlined_call_operand.vmem [shape: s32[8,1], index: 5, kind: input, shape index: {}]
  %s6 = inlined_call_operand.<no memory space> [shape: f32[1,1], index: 6, kind: input, shape index: {}]
  %s7 = inlined_call_operand.hbm [shape: f32[8,256], index: 7, kind: output, shape index: {0}]
  %s8 = inlined_call_operand.vmem [shape: f32[2,8,1], index: 8, kind: output, shape index: {1}]
  %s9 = inlined_call_operand.vmem [shape: f32[2,8,1], index: 9, kind: output, shape index: {2}]
  %10 = xla_tuple %s7, %s8, %s9
  %s11 = sld [smem:[#allocation0]]
  $region85: #{tpu_custom_call.1} parent=0
    _
  %s13 = ssub.s32 1, %s11
  %s14 = scalar_select 0, %s13, %s11
  %15 = sst [smem:[#allocation5]] %s6
  $region1: #{tpu_custom_call.1} parent=0
    #allocation6 [shape = 'u8[8192]{0}', space=vmem, size = 0x2000, scoped, tag = 'output window, operand 0']
    #allocation7 [shape = 's32[2]{0}', space=sflag, size = 0x8, scoped, tag = 'scoped memory for tpu_custom_call.1']
    %16 = vsyncpa [#allocation7], 0
    %s17 = scalar_lea.sflag [#allocation7], 1
    %18 = vsyncpa %s17, 0
    loop: start=0, step=1, limit=4
    $region2: #{tpu_custom_call.1} parent=1 // loop_pre_header
      _
    $region3: #{tpu_custom_call.1} parent=1 // loop_header
      %s20 = sphi 0, %s24
      %p21 = scmp.ge.s32.totalorder %s20, 4
      %s27 = sphi 0, %s39
      %s28 = sphi 0, %s35
      %s29 = sphi 0, %s27
      %s30 = sphi 0, %s28
      %s31 = sphi 0, %s29
      %s32 = sphi 0, %s30
      %s44 = sphi 0, %s46
      %s47 = sphi 0, %s44
      %s48 = sphi 0, %s47
      %s64 = sphi 0, %s48
      %s68 = sphi 0, %s68
      %s70 = sphi 0, %s68
      %s71 = sphi 0, %s70
      %s85 = sphi 0, %s71
      %s89 = sphi 0, %s89
      %s91 = sphi 0, %s89
      %s92 = sphi 0, %s91
      %s106 = sphi 0, %s92
      %s110 = sphi 0, %s110
      %s112 = sphi 0, %s110
      %s113 = sphi 0, %s112
      %s127 = sphi 0, %s113
      %s131 = sphi 0, %s131
      %s133 = sphi 0, %s131
      %s134 = sphi 0, %s133
      %s148 = sphi 0, %s134
      %s152 = sphi 0, %s152
      %s154 = sphi 0, %s152
      %s155 = sphi 0, %s154
      %s169 = sphi 0, %s155
      %s173 = sphi 0, %s173
      %s175 = sphi 0, %s173
      %s176 = sphi 0, %s175
      %s190 = sphi 0, %s176
      %s198 = sphi 0, %s200
      %s201 = sphi 0, %s198
      %s202 = sphi 0, %s201
      %s218 = sphi 0, %s202
      %s224 = sphi 0, %s226
      %s227 = sphi 0, %s224
      %s228 = sphi 0, %s227
      %s244 = sphi 0, %s228
      %s250 = sphi 0, %s252
      %s253 = sphi 0, %s250
      %s254 = sphi 0, %s253
      %s270 = sphi 0, %s254
    $region4: #{tpu_custom_call.1} parent=1 // loop_header_branch
      %23 = sbr.rel (%p21) target = $region8
    $region5: #{tpu_custom_call.1} parent=1 // loop_body
      %s25 = ssub.s32 %s20, 1
      %s26 = ssub.s32 %s20, 2
      %s33 = sadd.s32 1, %s28
      %p34 = scmp.ge.s32.totalorder %s33, 1
      %s35 = scalar_select %p34, 0, %s33
      %s36 = sadd.s32 1, %s27
      %s37 = scalar_select %p34, %s36, %s27
      %p38 = scmp.ge.s32.totalorder %s37, 2
      %s39 = scalar_select %p38, 0, %s37
      %s40 = sadd.s32 %s27, %s28
      %s41 = sadd.s32 %s39, %s35
      %s42 = ssub.s32 %s40, %s41
      %p43 = scmp.eq.s32.totalorder %s42, 0
      %s45 = sadd.s32 %s44, 1
      %s46 = scalar_select %p43, %s44, %s45
      %p49 = pneg %p43
      %p50 = scmp.eq.s32.totalorder %s20, 1
      %p51 = por %p49, %p50
      %p52 = scmp.ne.s32.totalorder %s44, %s47
      %p53 = scmp.eq.s32.totalorder %s20, 0
      %p54 = por %p52, %p53
      %p55 = scmp.ne.s32.totalorder %s44, %s47
      %p56 = scmp.eq.s32.totalorder %s25, 1
      %p57 = por %p55, %p56
      %p58 = scmp.ne.s32.totalorder %s47, %s48
      %p59 = scmp.eq.s32.totalorder %s25, 0
      %p60 = por %p58, %p59
      %p61 = scmp.ne.s32.totalorder %s47, %s48
      %p62 = scmp.eq.s32.totalorder %s26, 1
      %p63 = por %p61, %p62
      %p65 = scmp.ne.s32.totalorder %s48, %s64
      %p66 = scmp.eq.s32.totalorder %s26, 0
      %p67 = por %p65, %p66
      %s69 = sadd.s32 %s68, 1
      %p72 = scmp.eq.s32.totalorder %s20, 1
      %p73 = scmp.ne.s32.totalorder %s68, %s70
      %p74 = scmp.eq.s32.totalorder %s20, 0
      %p75 = por %p73, %p74
      %p76 = scmp.ne.s32.totalorder %s68, %s70
      %p77 = scmp.eq.s32.totalorder %s25, 1
      %p78 = por %p76, %p77
      %p79 = scmp.ne.s32.totalorder %s70, %s71
      %p80 = scmp.eq.s32.totalorder %s25, 0
      %p81 = por %p79, %p80
      %p82 = scmp.ne.s32.totalorder %s70, %s71
      %p83 = scmp.eq.s32.totalorder %s26, 1
      %p84 = por %p82, %p83
      %p86 = scmp.ne.s32.totalorder %s71, %s85
      %p87 = scmp.eq.s32.totalorder %s26, 0
      %p88 = por %p86, %p87
      %s90 = sadd.s32 %s89, 1
      %p93 = scmp.eq.s32.totalorder %s20, 1
      %p94 = scmp.ne.s32.totalorder %s89, %s91
      %p95 = scmp.eq.s32.totalorder %s20, 0
      %p96 = por %p94, %p95
      %p97 = scmp.ne.s32.totalorder %s89, %s91
      %p98 = scmp.eq.s32.totalorder %s25, 1
      %p99 = por %p97, %p98
      %p100 = scmp.ne.s32.totalorder %s91, %s92
      %p101 = scmp.eq.s32.totalorder %s25, 0
      %p102 = por %p100, %p101
      %p103 = scmp.ne.s32.totalorder %s91, %s92
      %p104 = scmp.eq.s32.totalorder %s26, 1
      %p105 = por %p103, %p104
      %p107 = scmp.ne.s32.totalorder %s92, %s106
      %p108 = scmp.eq.s32.totalorder %s26, 0
      %p109 = por %p107, %p108
      %s111 = sadd.s32 %s110, 1
      %p114 = scmp.eq.s32.totalorder %s20, 1
      %p115 = scmp.ne.s32.totalorder %s110, %s112
      %p116 = scmp.eq.s32.totalorder %s20, 0
      %p117 = por %p115, %p116
      %p118 = scmp.ne.s32.totalorder %s110, %s112
      %p119 = scmp.eq.s32.totalorder %s25, 1
      %p120 = por %p118, %p119
      %p121 = scmp.ne.s32.totalorder %s112, %s113
      %p122 = scmp.eq.s32.totalorder %s25, 0
      %p123 = por %p121, %p122
      %p124 = scmp.ne.s32.totalorder %s112, %s113
      %p125 = scmp.eq.s32.totalorder %s26, 1
      %p126 = por %p124, %p125
      %p128 = scmp.ne.s32.totalorder %s113, %s127
      %p129 = scmp.eq.s32.totalorder %s26, 0
      %p130 = por %p128, %p129
      %s132 = sadd.s32 %s131, 1
      %p135 = scmp.eq.s32.totalorder %s20, 1
      %p136 = scmp.ne.s32.totalorder %s131, %s133
      %p137 = scmp.eq.s32.totalorder %s20, 0
      %p138 = por %p136, %p137
      %p139 = scmp.ne.s32.totalorder %s131, %s133
      %p140 = scmp.eq.s32.totalorder %s25, 1
      %p141 = por %p139, %p140
      %p142 = scmp.ne.s32.totalorder %s133, %s134
      %p143 = scmp.eq.s32.totalorder %s25, 0
      %p144 = por %p142, %p143
      %p145 = scmp.ne.s32.totalorder %s133, %s134
      %p146 = scmp.eq.s32.totalorder %s26, 1
      %p147 = por %p145, %p146
      %p149 = scmp.ne.s32.totalorder %s134, %s148
      %p150 = scmp.eq.s32.totalorder %s26, 0
      %p151 = por %p149, %p150
      %s153 = sadd.s32 %s152, 1
      %p156 = scmp.eq.s32.totalorder %s20, 1
      %p157 = scmp.ne.s32.totalorder %s152, %s154
      %p158 = scmp.eq.s32.totalorder %s20, 0
      %p159 = por %p157, %p158
      %p160 = scmp.ne.s32.totalorder %s152, %s154
      %p161 = scmp.eq.s32.totalorder %s25, 1
      %p162 = por %p160, %p161
      %p163 = scmp.ne.s32.totalorder %s154, %s155
      %p164 = scmp.eq.s32.totalorder %s25, 0
      %p165 = por %p163, %p164
      %p166 = scmp.ne.s32.totalorder %s154, %s155
      %p167 = scmp.eq.s32.totalorder %s26, 1
      %p168 = por %p166, %p167
      %p170 = scmp.ne.s32.totalorder %s155, %s169
      %p171 = scmp.eq.s32.totalorder %s26, 0
      %p172 = por %p170, %p171
      %s174 = sadd.s32 %s173, 1
      %p177 = scmp.eq.s32.totalorder %s20, 1
      %p178 = scmp.ne.s32.totalorder %s173, %s175
      %p179 = scmp.eq.s32.totalorder %s20, 0
      %p180 = por %p178, %p179
      %p181 = scmp.ne.s32.totalorder %s173, %s175
      %p182 = scmp.eq.s32.totalorder %s25, 1
      %p183 = por %p181, %p182
      %p184 = scmp.ne.s32.totalorder %s175, %s176
      %p185 = scmp.eq.s32.totalorder %s25, 0
      %p186 = por %p184, %p185
      %p187 = scmp.ne.s32.totalorder %s175, %s176
      %p188 = scmp.eq.s32.totalorder %s26, 1
      %p189 = por %p187, %p188
      %p191 = scmp.ne.s32.totalorder %s176, %s190
      %p192 = scmp.eq.s32.totalorder %s26, 0
      %p193 = por %p191, %p192
      %s194 = sadd.s32 %s27, %s28
      %s195 = sadd.s32 %s39, %s35
      %s196 = ssub.s32 %s194, %s195
      %p197 = scmp.eq.s32.totalorder %s196, 0
      %s199 = sadd.s32 %s198, 1
      %s200 = scalar_select %p197, %s198, %s199
      %p203 = pneg %p197
      %p204 = scmp.eq.s32.totalorder %s20, 1
      %p205 = por %p203, %p204
      %p206 = scmp.ne.s32.totalorder %s198, %s201
      %p207 = scmp.eq.s32.totalorder %s20, 0
      %p208 = por %p206, %p207
      %p209 = scmp.ne.s32.totalorder %s198, %s201
      %p210 = scmp.eq.s32.totalorder %s25, 1
      %p211 = por %p209, %p210
      %p212 = scmp.ne.s32.totalorder %s201, %s202
      %p213 = scmp.eq.s32.totalorder %s25, 0
      %p214 = por %p212, %p213
      %p215 = scmp.ne.s32.totalorder %s201, %s202
      %p216 = scmp.eq.s32.totalorder %s26, 1
      %p217 = por %p215, %p216
      %p219 = scmp.ne.s32.totalorder %s202, %s218
      %p220 = scmp.eq.s32.totalorder %s26, 0
      %p221 = por %p219, %p220
      %s222 = ssub.s32 %s27, %s39
      %p223 = scmp.eq.s32.totalorder %s222, 0
      %s225 = sadd.s32 %s224, 1
      %s226 = scalar_select %p223, %s224, %s225
      %p229 = pneg %p223
      %p230 = scmp.eq.s32.totalorder %s20, 1
      %p231 = por %p229, %p230
      %p232 = scmp.ne.s32.totalorder %s224, %s227
      %p233 = scmp.eq.s32.totalorder %s20, 0
      %p234 = por %p232, %p233
      %p235 = scmp.ne.s32.totalorder %s224, %s227
      %p236 = scmp.eq.s32.totalorder %s25, 1
      %p237 = por %p235, %p236
      %p238 = scmp.ne.s32.totalorder %s227, %s228
      %p239 = scmp.eq.s32.totalorder %s25, 0
      %p240 = por %p238, %p239
      %p241 = scmp.ne.s32.totalorder %s227, %s228
      %p242 = scmp.eq.s32.totalorder %s26, 1
      %p243 = por %p241, %p242
      %p245 = scmp.ne.s32.totalorder %s228, %s244
      %p246 = scmp.eq.s32.totalorder %s26, 0
      %p247 = por %p245, %p246
      %s248 = ssub.s32 %s27, %s39
      %p249 = scmp.eq.s32.totalorder %s248, 0
      %s251 = sadd.s32 %s250, 1
      %s252 = scalar_select %p249, %s250, %s251
      %p255 = pneg %p249
      %p256 = scmp.eq.s32.totalorder %s20, 1
      %p257 = por %p255, %p256
      %p258 = scmp.ne.s32.totalorder %s250, %s253
      %p259 = scmp.eq.s32.totalorder %s20, 0
      %p260 = por %p258, %p259
      %p261 = scmp.ne.s32.totalorder %s250, %s253
      %p262 = scmp.eq.s32.totalorder %s25, 1
      %p263 = por %p261, %p262
      %p264 = scmp.ne.s32.totalorder %s253, %s254
      %p265 = scmp.eq.s32.totalorder %s25, 0
      %p266 = por %p264, %p265
      %p267 = scmp.ne.s32.totalorder %s253, %s254
      %p268 = scmp.eq.s32.totalorder %s26, 1
      %p269 = por %p267, %p268
      %p271 = scmp.ne.s32.totalorder %s254, %s270
      %p272 = scmp.eq.s32.totalorder %s26, 0
      %p273 = por %p271, %p272
      %p274 = scmp.le.s32.totalorder 1, %s20
      %p275 = scmp.lt.s32.totalorder %s20, 3
      %p276 = pnand %p274, %p275
      %p277 = pneg %p276
      // Predicated region
      $region9: #{tpu_custom_call.1} parent=5 // pred_check
        _
      $region10: #{tpu_custom_call.1} parent=5 // pred_check_branch
        %279 = sbr.rel (%p276) target = $region12
      $region11: #{tpu_custom_call.1} parent=5 // pred_region
        %s280 = ssub.s32 %s20, 1
        // Predicated region
        $region13: #{tpu_custom_call.1} parent=11 // pred_check
          %p281 = pneg %p81
        $region14: #{tpu_custom_call.1} parent=11 // pred_check_branch
          %283 = sbr.rel (%p281) target = $region16
        $region15: #{tpu_custom_call.1} parent=11 // pred_region
          _
        $region16: #{tpu_custom_call.1} parent=11 // pred_fallthru
          _
        // Predicated region
        $region17: #{tpu_custom_call.1} parent=11 // pred_check
          %p284 = pneg %p102
        $region18: #{tpu_custom_call.1} parent=11 // pred_check_branch
          %286 = sbr.rel (%p284) target = $region20
        $region19: #{tpu_custom_call.1} parent=11 // pred_region
          _
        $region20: #{tpu_custom_call.1} parent=11 // pred_fallthru
          _
        // Predicated region
        $region21: #{tpu_custom_call.1} parent=11 // pred_check
          %p287 = pneg %p123
        $region22: #{tpu_custom_call.1} parent=11 // pred_check_branch
          %289 = sbr.rel (%p287) target = $region24
        $region23: #{tpu_custom_call.1} parent=11 // pred_region
          _
        $region24: #{tpu_custom_call.1} parent=11 // pred_fallthru
          _
        // Predicated region
        $region25: #{tpu_custom_call.1} parent=11 // pred_check
          %p290 = pneg %p144
        $region26: #{tpu_custom_call.1} parent=11 // pred_check_branch
          %292 = sbr.rel (%p290) target = $region28
        $region27: #{tpu_custom_call.1} parent=11 // pred_region
          _
        $region28: #{tpu_custom_call.1} parent=11 // pred_fallthru
          _
        // Predicated region
        $region29: #{tpu_custom_call.1} parent=11 // pred_check
          %p293 = pneg %p165
        $region30: #{tpu_custom_call.1} parent=11 // pred_check_branch
          %295 = sbr.rel (%p293) target = $region32
        $region31: #{tpu_custom_call.1} parent=11 // pred_region
          _
        $region32: #{tpu_custom_call.1} parent=11 // pred_fallthru
          _
        // Predicated region
        $region33: #{tpu_custom_call.1} parent=11 // pred_check
          %p296 = pneg %p186
        $region34: #{tpu_custom_call.1} parent=11 // pred_check_branch
          %298 = sbr.rel (%p296) target = $region36
        $region35: #{tpu_custom_call.1} parent=11 // pred_region
          _
        $region36: #{tpu_custom_call.1} parent=11 // pred_fallthru
          _
      $region12: #{tpu_custom_call.1} parent=5 // pred_fallthru
        _
      %p299 = scmp.lt.s32.totalorder %s20, 2
      // Predicated region
      $region37: #{tpu_custom_call.1} parent=5 // pred_check
        %p300 = pneg %p299
      $region38: #{tpu_custom_call.1} parent=5 // pred_check_branch
        %302 = sbr.rel (%p300) target = $region40
      $region39: #{tpu_custom_call.1} parent=5 // pred_region
        // Predicated region
        $region41: #{tpu_custom_call.1} parent=39 // pred_check
          %p303 = pneg %p54
        $region42: #{tpu_custom_call.1} parent=39 // pred_check_branch
          %305 = sbr.rel (%p303) target = $region44
        $region43: #{tpu_custom_call.1} parent=39 // pred_region
          %s306 = sadd.s32 %s27, %s28
          %s307 = smul.u32 16, %s306
          %p308 = scmp.lt.s32.totalorder %s307, 31
          %s309 = scalar_select %p308, %s307, 31
          %s310 = smul.addr %s309, 4
          %s311 = scalar_lea.vmem %s0, %s310
          %s312 = sadd.s32 %s27, %s28
          %s313 = smul.u32 16, %s312
        $region44: #{tpu_custom_call.1} parent=39 // pred_fallthru
          _
      $region40: #{tpu_custom_call.1} parent=5 // pred_fallthru
        _
      %p314 = scmp.le.s32.totalorder 1, %s20
      %p315 = scmp.lt.s32.totalorder %s20, 3
      %p316 = pnand %p314, %p315
      %p317 = pneg %p316
      // Predicated region
      $region45: #{tpu_custom_call.1} parent=5 // pred_check
        _
      $region46: #{tpu_custom_call.1} parent=5 // pred_check_branch
        %319 = sbr.rel (%p316) target = $region48
      $region47: #{tpu_custom_call.1} parent=5 // pred_region
        %s320 = ssub.s32 %s20, 1
        %s321 = sadd.s32 %s29, %s30
        %s322 = smul.u32 16, %s321
        %p323 = scmp.lt.s32.totalorder %s322, 31
        %s324 = scalar_select %p323, %s322, 31
        %s325 = smul.addr %s324, 4
        %s326 = scalar_lea.vmem %s0, %s325
        %p327 = pneg %p60
        %p328 = pneg %p57
        %p329 = pneg %p81
        %p330 = pneg %p78
        %p331 = pneg %p102
        %p332 = pneg %p99
        %p333 = pneg %p123
        %p334 = pneg %p120
        %p335 = pneg %p144
        %p336 = pneg %p141
        %p337 = pneg %p165
        %p338 = pneg %p162
        %p339 = pneg %p186
        %p340 = pneg %p183
        %p341 = pneg %p214
        %p342 = pneg %p211
        %s343 = sand.u32 %s201, 1
        %s344 = scalar_lea.sflag [#allocation7], %s343
        %s345 = sand.u32 %s201, 1
        %s346 = smul.addr %s345, 8
        %s347 = scalar_lea.vmem [#allocation6], %s346
        %p348 = pneg %p240
        %p349 = pneg %p237
        %p350 = scmp.lt.s32.totalorder %s29, 1
        %s351 = scalar_select %p350, %s29, 1
        %s352 = smul.addr %s351, 8
        %s353 = scalar_lea.vmem %s8, %s352
        %p354 = pneg %p266
        %p355 = pneg %p263
        %p356 = scmp.lt.s32.totalorder %s29, 1
        %s357 = scalar_select %p356, %s29, 1
        %s358 = smul.addr %s357, 8
        %s359 = scalar_lea.vmem %s9, %s358
        %s360 = sadd.s32 %s29, %s30
        %s361 = smul.u32 16, %s360
        %p362 = scmp.lt.s32.totalorder %s361, 31
        %s363 = scalar_select %p362, %s361, 31
        %s364 = smul.addr %s363, 4
        %s365 = scalar_lea.vmem %s0, %s364
        %s366 = sadd.s32 %s29, %s30
        %s367 = smul.u32 16, %s366
        %s368 = sadd.s32 %s29, %s30
        %p369 = scmp.lt.s32.totalorder %s29, 1
        %s370 = scalar_select %p369, %s29, 1
        %s371 = smul.addr %s370, 8
        %s372 = scalar_lea.vmem %s8, %s371
        %p373 = scmp.lt.s32.totalorder %s29, 1
        %s374 = scalar_select %p373, %s29, 1
        %s375 = smul.addr %s374, 8
        %s376 = scalar_lea.vmem %s9, %s375
        %p379 = scmp.eq.s32.totalorder %s30, 0
        // Predicated region
        $region49: #{tpu_custom_call.1} parent=47 // pred_check
          %p380 = pneg %p379
        $region50: #{tpu_custom_call.1} parent=47 // pred_check_branch
          %382 = sbr.rel (%p380) target = $region52
        $region51: #{tpu_custom_call.1} parent=47 // pred_region
          %vm383 = vcmask 7168
          %384 = vst.msk [vmem:[#allocation2] sm:$0xff] %vm383, -inf
          %385 = vst.msk [vmem:[#allocation3] sm:$0xff] %vm383, 0.0
          %386 = vst.msk [vmem:[#allocation4] sm:$0xff] %vm383, 0.0
        $region52: #{tpu_custom_call.1} parent=47 // pred_fallthru
          _
        %v387 = vld [vmem:[%s365] sm:$0xf]
        %v388 = vld [vmem:[%s365 + $0x4] sm:$0xf]
        %v389 = vld [vmem:[%s365 + $0x8] sm:$0xf]
        %v390 = vld [vmem:[%s365 + $0xc] sm:$0xf]
        %v391 = vld [vmem:[%s365 + $0x10] sm:$0xf]
        %v392 = vld [vmem:[%s365 + $0x14] sm:$0xf]
        %v393 = vld [vmem:[%s365 + $0x18] sm:$0xf]
        %v394 = vld [vmem:[%s365 + $0x1c] sm:$0xf]
        %v395 = vld [vmem:[%s365 + $0x20] sm:$0xf]
        %v396 = vld [vmem:[%s365 + $0x24] sm:$0xf]
        %v397 = vld [vmem:[%s365 + $0x28] sm:$0xf]
        %v398 = vld [vmem:[%s365 + $0x2c] sm:$0xf]
        %v399 = vld [vmem:[%s365 + $0x30] sm:$0xf]
        %v400 = vld [vmem:[%s365 + $0x34] sm:$0xf]
        %v401 = vld [vmem:[%s365 + $0x38] sm:$0xf]
        %v402 = vld [vmem:[%s365 + $0x3c] sm:$0xf]
        %v403 = vld [vmem:[%s1] sm:$0xf]
        %v404 = vld [vmem:[%s1 + $0x4] sm:$0xf]
        %v405 = vld [vmem:[%s1 + $0x8] sm:$0xf]
        %v406 = vld [vmem:[%s1 + $0xc] sm:$0xf]
        %v407 = vld [vmem:[%s1 + $0x10] sm:$0xf]
        %v408 = vld [vmem:[%s1 + $0x14] sm:$0xf]
        %v409 = vld [vmem:[%s1 + $0x18] sm:$0xf]
        %v410 = vld [vmem:[%s1 + $0x1c] sm:$0xf]
        %v411 = vld [vmem:[%s2] sm:$0x1]
        %v413 = vlaneseq
        %v414 = vshrl.u32 %v413, 7
        %v415 = vsub.s32 0, %v414
        %v416 = vrot.slane %v411, %v415
        %v434 = vunpack.c.l.b16 %v387
        %v435 = vunpack.c.l.b16 %v388
        %v436 = vunpack.c.l.b16 %v389
        %v437 = vunpack.c.l.b16 %v390
        %v438 = vunpack.c.l.b16 %v391
        %v439 = vunpack.c.l.b16 %v392
        %v440 = vunpack.c.l.b16 %v393
        %v441 = vunpack.c.l.b16 %v394
        %v442 = vunpack.c.l.b16 %v395
        %v443 = vunpack.c.l.b16 %v396
        %v444 = vunpack.c.l.b16 %v397
        %v445 = vunpack.c.l.b16 %v398
        %v446 = vunpack.c.l.b16 %v399
        %v447 = vunpack.c.l.b16 %v400
        %v448 = vunpack.c.l.b16 %v401
        %v449 = vunpack.c.l.b16 %v402
        %v450 = vpack.c.b16 %v435, %v434
        %v451 = vpack.c.b16 %v437, %v436
        %v452 = vpack.c.b16 %v439, %v438
        %v453 = vpack.c.b16 %v441, %v440
        %v454 = vpack.c.b16 %v443, %v442
        %v455 = vpack.c.b16 %v445, %v444
        %v456 = vpack.c.b16 %v447, %v446
        %v457 = vpack.c.b16 %v449, %v448
        %v466 = vunpack.c.l.b16 %v403
        %v467 = vunpack.c.l.b16 %v404
        %v468 = vunpack.c.l.b16 %v405
        %v469 = vunpack.c.l.b16 %v406
        %v470 = vunpack.c.l.b16 %v407
        %v471 = vunpack.c.l.b16 %v408
        %v472 = vunpack.c.l.b16 %v409
        %v473 = vunpack.c.l.b16 %v410
        %v474 = vpack.c.b16 %v467, %v466
        %v475 = vpack.c.b16 %v469, %v468
        %v476 = vpack.c.b16 %v471, %v470
        %v477 = vpack.c.b16 %v473, %v472
        %vm482 = vcmask 523264
        %v484 = vsel %vm482, %v450, 0
        %v487 = vsel %vm482, %v451, 0
        %v490 = vsel %vm482, %v452, 0
        %v493 = vsel %vm482, %v453, 0
        %v496 = vsel %vm482, %v454, 0
        %v499 = vsel %vm482, %v455, 0
        %v502 = vsel %vm482, %v456, 0
        %v505 = vsel %vm482, %v457, 0
        %507 = vmatprep.subr.bf16.mxu0 0
        %508 = vmatpush1.bf16.msra.mxu0 %v474
        %509 = vmatprep.subr.bf16.mxu0 0
        %510 = vmatpush1.bf16.msra.mxu0 %v475
        %511 = vmatprep.subr.bf16.mxu0 0
        %512 = vmatpush1.bf16.msra.mxu0 %v476
        %513 = vmatprep.subr.bf16.mxu0 0
        %514 = vmatpush1.bf16.msra.mxu0 %v477
        %515 = vmatprep.subr.bf16.mxu0 0
        %516 = vmatpush1.bf16.msra.mxu0 0
        %517 = vmatprep.subr.bf16.mxu0 0
        %518 = vmatpush1.bf16.msra.mxu0 0
        %519 = vmatprep.subr.bf16.mxu0 0
        %520 = vmatpush1.bf16.msra.mxu0 0
        %521 = vmatprep.subr.bf16.mxu0 0
        %522 = vmatpush1.bf16.msra.mxu0 0
        %523 = vmatprep.subr.bf16.mxu0 0
        %524 = vmatpush1.bf16.msra.mxu0 0
        %525 = vmatprep.subr.bf16.mxu0 0
        %526 = vmatpush1.bf16.msra.mxu0 0
        %527 = vmatprep.subr.bf16.mxu0 0
        %528 = vmatpush1.bf16.msra.mxu0 0
        %529 = vmatprep.subr.bf16.mxu0 0
        %530 = vmatpush1.bf16.msra.mxu0 0
        %531 = vmatprep.subr.bf16.mxu0 0
        %532 = vmatpush1.bf16.msra.mxu0 0
        %533 = vmatprep.subr.bf16.mxu0 0
        %534 = vmatpush1.bf16.msra.mxu0 0
        %535 = vmatprep.subr.bf16.mxu0 0
        %536 = vmatpush1.bf16.msra.mxu0 0
        %537 = vmatprep.subr.bf16.mxu0 0
        %538 = vmatpush1.bf16.msra.mxu0 0
        %539 = vmatprep.mubr.bf16.mxu0 0
        %540 = vmatmul.mubr.bf16.gmra.mrb[0].mxu0 %v484
        %v541 = vpop.f32.mrb[0].mxu0
        %v542 = vadd.f32 %v416, %v541
        %v543 = vpop.f32.mrb[0].mxu0
        %v544 = vpop.f32.mrb[0].mxu0
        %v545 = vadd.f32 %v416, %v544
        %v546 = vpop.f32.mrb[0].mxu0
        %547 = vmatprep.mubr.bf16.mxu0 0
        %548 = vmatmul.mubr.bf16.gmra.mrb[0].mxu0 %v487
        %v549 = vpop.f32.mrb[0].mxu0
        %v550 = vadd.f32 %v416, %v549
        %v551 = vpop.f32.mrb[0].mxu0
        %v552 = vpop.f32.mrb[0].mxu0
        %v553 = vadd.f32 %v416, %v552
        %v554 = vpop.f32.mrb[0].mxu0
        %555 = vmatprep.mubr.bf16.mxu0 0
        %556 = vmatmul.mubr.bf16.gmra.mrb[0].mxu0 %v490
        %v557 = vpop.f32.mrb[0].mxu0
        %v558 = vadd.f32 %v416, %v557
        %v559 = vpop.f32.mrb[0].mxu0
        %v560 = vpop.f32.mrb[0].mxu0
        %v561 = vadd.f32 %v416, %v560
        %v562 = vpop.f32.mrb[0].mxu0
        %563 = vmatprep.mubr.bf16.mxu0 0
        %564 = vmatmul.mubr.bf16.gmra.mrb[0].mxu0 %v493
        %v565 = vpop.f32.mrb[0].mxu0
        %v566 = vadd.f32 %v416, %v565
        %v567 = vpop.f32.mrb[0].mxu0
        %v568 = vpop.f32.mrb[0].mxu0
        %v569 = vadd.f32 %v416, %v568
        %v570 = vpop.f32.mrb[0].mxu0
        %571 = vmatprep.mubr.bf16.mxu0 0
        %572 = vmatmul.mubr.bf16.gmra.mrb[0].mxu0 %v496
        %v573 = vpop.f32.mrb[0].mxu0
        %v574 = vadd.f32 %v416, %v573
        %v575 = vpop.f32.mrb[0].mxu0
        %v576 = vpop.f32.mrb[0].mxu0
        %v577 = vadd.f32 %v416, %v576
        %v578 = vpop.f32.mrb[0].mxu0
        %579 = vmatprep.mubr.bf16.mxu0 0
        %580 = vmatmul.mubr.bf16.gmra.mrb[0].mxu0 %v499
        %v581 = vpop.f32.mrb[0].mxu0
        %v582 = vadd.f32 %v416, %v581
        %v583 = vpop.f32.mrb[0].mxu0
        %v584 = vpop.f32.mrb[0].mxu0
        %v585 = vadd.f32 %v416, %v584
        %v586 = vpop.f32.mrb[0].mxu0
        %587 = vmatprep.mubr.bf16.mxu0 0
        %588 = vmatmul.mubr.bf16.gmra.mrb[0].mxu0 %v502
        %v589 = vpop.f32.mrb[0].mxu0
        %v590 = vadd.f32 %v416, %v589
        %v591 = vpop.f32.mrb[0].mxu0
        %v592 = vpop.f32.mrb[0].mxu0
        %v593 = vadd.f32 %v416, %v592
        %v594 = vpop.f32.mrb[0].mxu0
        %595 = vmatprep.mubr.bf16.mxu0 0
        %596 = vmatmul.mubr.bf16.gmra.mrb[0].mxu0 %v505
        %v597 = vpop.f32.mrb[0].mxu0
        %v598 = vadd.f32 %v416, %v597
        %v599 = vpop.f32.mrb[0].mxu0
        %v600 = vpop.f32.mrb[0].mxu0
        %v601 = vadd.f32 %v416, %v600
        %v602 = vpop.f32.mrb[0].mxu0
        %603 = vdwg.mxu0
        %v604 = vunpack.c.l.bf16 %v387
        %v605 = vunpack.c.l.bf16 %v388
        %v606 = vunpack.c.l.bf16 %v389
        %v607 = vunpack.c.l.bf16 %v390
        %v608 = vunpack.c.l.bf16 %v391
        %v609 = vunpack.c.l.bf16 %v392
        %v610 = vunpack.c.l.bf16 %v393
        %v611 = vunpack.c.l.bf16 %v394
        %v612 = vunpack.c.l.bf16 %v395
        %v613 = vunpack.c.l.bf16 %v396
        %v614 = vunpack.c.l.bf16 %v397
        %v615 = vunpack.c.l.bf16 %v398
        %v616 = vunpack.c.l.bf16 %v399
        %v617 = vunpack.c.l.bf16 %v400
        %v618 = vunpack.c.l.bf16 %v401
        %v619 = vunpack.c.l.bf16 %v402
        %v620 = vmul.f32 %v542, %v604
        %v621 = vmul.f32 %v545, %v605
        %v622 = vmul.f32 %v550, %v606
        %v623 = vmul.f32 %v553, %v607
        %v624 = vmul.f32 %v558, %v608
        %v625 = vmul.f32 %v561, %v609
        %v626 = vmul.f32 %v566, %v610
        %v627 = vmul.f32 %v569, %v611
        %v628 = vmul.f32 %v574, %v612
        %v629 = vmul.f32 %v577, %v613
        %v630 = vmul.f32 %v582, %v614
        %v631 = vmul.f32 %v585, %v615
        %v632 = vmul.f32 %v590, %v616
        %v633 = vmul.f32 %v593, %v617
        %v634 = vmul.f32 %v598, %v618
        %v635 = vmul.f32 %v601, %v619
        %v636 = vpack.c.bf16 %v621, %v620
        %v637 = vpack.c.bf16 %v623, %v622
        %v638 = vpack.c.bf16 %v625, %v624
        %v639 = vpack.c.bf16 %v627, %v626
        %v640 = vpack.c.bf16 %v629, %v628
        %v641 = vpack.c.bf16 %v631, %v630
        %v642 = vpack.c.bf16 %v633, %v632
        %v643 = vpack.c.bf16 %v635, %v634
        %s644 = sld [smem:[#allocation5]]
        %v645 = vstv %s644
        %v647 = vsel %vm482, 1065369472, 0
        %v650 = vsel %vm482, %v636, 0
        %v653 = vsel %vm482, %v637, 0
        %v656 = vsel %vm482, %v638, 0
        %v659 = vsel %vm482, %v639, 0
        %v662 = vsel %vm482, %v640, 0
        %v665 = vsel %vm482, %v641, 0
        %v668 = vsel %vm482, %v642, 0
        %v671 = vsel %vm482, %v643, 0
        %673 = vmatprep.subr.bf16.mxu0 0
        %674 = vmatpush1.bf16.xpose.msra.mxu0 %v650
        %675 = vmatprep.subr.bf16.mxu0 0
        %676 = vmatpush1.bf16.xpose.msra.mxu0 %v653
        %677 = vmatprep.subr.bf16.mxu0 0
        %678 = vmatpush1.bf16.xpose.msra.mxu0 %v656
        %679 = vmatprep.subr.bf16.mxu0 0
        %680 = vmatpush1.bf16.xpose.msra.mxu0 %v659
        %681 = vmatprep.subr.bf16.mxu0 0
        %682 = vmatpush1.bf16.xpose.msra.mxu0 %v662
        %683 = vmatprep.subr.bf16.mxu0 0
        %684 = vmatpush1.bf16.xpose.msra.mxu0 %v665
        %685 = vmatprep.subr.bf16.mxu0 0
        %686 = vmatpush1.bf16.xpose.msra.mxu0 %v668
        %687 = vmatprep.subr.bf16.mxu0 0
        %688 = vmatpush1.bf16.xpose.msra.mxu0 %v671
        %689 = vmatprep.subr.bf16.mxu0 0
        %690 = vmatpush1.bf16.xpose.msra.mxu0 0
        %691 = vmatprep.subr.bf16.mxu0 0
        %692 = vmatpush1.bf16.xpose.msra.mxu0 0
        %693 = vmatprep.subr.bf16.mxu0 0
        %694 = vmatpush1.bf16.xpose.msra.mxu0 0
        %695 = vmatprep.subr.bf16.mxu0 0
        %696 = vmatpush1.bf16.xpose.msra.mxu0 0
        %697 = vmatprep.subr.bf16.mxu0 0
        %698 = vmatpush1.bf16.xpose.msra.mxu0 0
        %699 = vmatprep.subr.bf16.mxu0 0
        %700 = vmatpush1.bf16.xpose.msra.mxu0 0
        %701 = vmatprep.subr.bf16.mxu0 0
        %702 = vmatpush1.bf16.xpose.msra.mxu0 0
        %703 = vmatprep.subr.bf16.mxu0 0
        %704 = vmatpush1.bf16.xpose.msra.mxu0 0
        %705 = vmatprep.mubr.bf16.mxu0 0
        %706 = vmatmul.mubr.bf16.gmra.mrb[0].mxu0 %v647
        %v707 = vpop.f32.mrb[0].mxu0
        %v708 = vadd.f32 %v645, %v707
        %v709 = vpop.f32.mrb[0].mxu0
        %v710 = vpop.f32.mrb[0].mxu0
        %v711 = vpop.f32.mrb[0].mxu0
        %712 = vdwg.mxu0
        %v713 = vmax.f32 %v708, 1e-16
        %v714 = vrsqrt.pop %v713
        %v715 = vld [vmem:[%s3] sm:$0xf]
        %v716 = vld [vmem:[%s4] sm:$0xff]
        %718 = vset.pattern.permute.xlu0 0
        %719 = vperm.xlu0 %718, %v716
        %v720 = vpop.permute.xlu0 %719
        %v723 = vsel %vm482, %v715, 0
        %725 = vmatprep.subr.bf16.mxu0 0
        %726 = vmatpush1.bf16.xpose.msra.mxu0 %v484
        %727 = vmatprep.subr.bf16.mxu0 0
        %728 = vmatpush1.bf16.xpose.msra.mxu0 %v487
        %729 = vmatprep.subr.bf16.mxu0 0
        %730 = vmatpush1.bf16.xpose.msra.mxu0 %v490
        %731 = vmatprep.subr.bf16.mxu0 0
        %732 = vmatpush1.bf16.xpose.msra.mxu0 %v493
        %733 = vmatprep.subr.bf16.mxu0 0
        %734 = vmatpush1.bf16.xpose.msra.mxu0 %v496
        %735 = vmatprep.subr.bf16.mxu0 0
        %736 = vmatpush1.bf16.xpose.msra.mxu0 %v499
        %737 = vmatprep.subr.bf16.mxu0 0
        %738 = vmatpush1.bf16.xpose.msra.mxu0 %v502
        %739 = vmatprep.subr.bf16.mxu0 0
        %740 = vmatpush1.bf16.xpose.msra.mxu0 %v505
        %741 = vmatprep.subr.bf16.mxu0 0
        %742 = vmatpush1.bf16.xpose.msra.mxu0 0
        %743 = vmatprep.subr.bf16.mxu0 0
        %744 = vmatpush1.bf16.xpose.msra.mxu0 0
        %745 = vmatprep.subr.bf16.mxu0 0
        %746 = vmatpush1.bf16.xpose.msra.mxu0 0
        %747 = vmatprep.subr.bf16.mxu0 0
        %748 = vmatpush1.bf16.xpose.msra.mxu0 0
        %749 = vmatprep.subr.bf16.mxu0 0
        %750 = vmatpush1.bf16.xpose.msra.mxu0 0
        %751 = vmatprep.subr.bf16.mxu0 0
        %752 = vmatpush1.bf16.xpose.msra.mxu0 0
        %753 = vmatprep.subr.bf16.mxu0 0
        %754 = vmatpush1.bf16.xpose.msra.mxu0 0
        %755 = vmatprep.subr.bf16.mxu0 0
        %756 = vmatpush1.bf16.xpose.msra.mxu0 0
        %757 = vmatprep.mubr.bf16.mxu0 0
        %758 = vmatmul.mubr.bf16.gmra.mrb[0].mxu0 %v723
        %v759 = vpop.f32.mrb[0].mxu0
        %v760 = vadd.f32 %v720, %v759
        %v761 = vpop.f32.mrb[0].mxu0
        %v762 = vpop.f32.mrb[0].mxu0
        %v763 = vpop.f32.mrb[0].mxu0
        %764 = vdwg.mxu0
        %v765 = vlaneseq
        %v766 = vshrl.u32 %v765, 7
        %v767 = vsub.s32 0, %v766
        %v768 = vrot.slane %v714, %v767
        %v769 = vmul.f32 %v760, %v768
        %770 = vst [vmem:[%s347] sm:$0xff] %v769
        %s771 = sadd.s32 %s29, %s30
        %s772 = smul.u32 %s771, 128
        %v773 = vlaneseq
        %v774 = vand.u32 %v773, 127
        %v775 = vstv %s772
        %v776 = vadd.s32 %v775, %v774
        %vm777 = vcmp.lt.s32.totalorder %v776, 16
        %v778 = vsel %vm777, %v769, -1e+30
        %v779 = vld [vmem:[#allocation2] sm:$0xff]
        %780 = vmax.xlane.f32.xlu0 %v778
        %v781 = vpop.xlane.xlu0 %780
        %v782 = vmax.f32 %v779, %v781
        %v783 = vsub.f32 %v779, %v782
        %v784 = vmul.f32 %v783, 1.442695
        %v785 = vpow.pop %v784
        %v786 = vld [vmem:[#allocation3] sm:$0xff]
        %v787 = vmul.f32 %v785, %v786
        %789 = vset.pattern.permute.xlu0 0
        %790 = vperm.xlu0 %789, %v782
        %v791 = vpop.permute.xlu0 %790
        %v793 = vsub.f32 %v778, %v791
        %v794 = vmul.f32 %v793, 1.442695
        %v795 = vpow.pop %v794
        %796 = vadd.xlane.f32.xlu0 %v795
        %v797 = vpop.xlane.xlu0 %796
        %v798 = vadd.f32 %v787, %v797
        %vm799 = vcmask 7168
        %800 = vst.msk [vmem:[#allocation3] sm:$0xff] %vm799, %v798
        %801 = vst.msk [vmem:[#allocation2] sm:$0xff] %vm799, %v782
        %v802 = vld [vmem:[#allocation4] sm:$0xff]
        %v803 = vld [vmem:[%s5] sm:$0xff]
        %804 = vset.pattern.permute.xlu0 0
        %805 = vperm.xlu0 %804, %v803
        %v806 = vpop.permute.xlu0 %805
        %vm807 = vcmp.eq.s32.totalorder %v776, %v806
        %v808 = vsel %vm807, %v769, 0.0
        %809 = vadd.xlane.f32.xlu0 %v808
        %v810 = vpop.xlane.xlu0 %809
        %v811 = vadd.f32 %v802, %v810
        %812 = vst.msk [vmem:[#allocation4] sm:$0xff] %vm799, %v811
        // Predicated region
        $region53: #{tpu_custom_call.1} parent=47 // pred_check
          %p813 = pneg %p379
        $region54: #{tpu_custom_call.1} parent=47 // pred_check_branch
          %815 = sbr.rel (%p813) target = $region56
        $region55: #{tpu_custom_call.1} parent=47 // pred_region
          %v816 = vld [vmem:[#allocation2] sm:$0xff]
          %v817 = vld [vmem:[#allocation3] sm:$0xff]
          %v818 = vlog2.pop %v817
          %v819 = vmul.f32 %v818, 0.6931472
          %v820 = vadd.f32 %v816, %v819
          %821 = vst.msk [vmem:[%s372] sm:$0xff] %vm799, %v820
          %v822 = vld [vmem:[#allocation4] sm:$0xff]
          %823 = vst.msk [vmem:[%s376] sm:$0xff] %vm799, %v822
        $region56: #{tpu_custom_call.1} parent=47 // pred_fallthru
          _
        %s824 = sand.u32 %s201, 1
        %s825 = scalar_lea.sflag [#allocation7], %s824
        %s826 = sand.u32 %s201, 1
        %s827 = smul.addr %s826, 8
        %s828 = scalar_lea.vmem [#allocation6], %s827
        %p829 = scmp.lt.s32.totalorder %s29, 1
        %s830 = scalar_select %p829, %s29, 1
        %s831 = smul.addr %s830, 8
        %s832 = scalar_lea.vmem %s8, %s831
        %p833 = scmp.lt.s32.totalorder %s29, 1
        %s834 = scalar_select %p833, %s29, 1
        %s835 = smul.addr %s834, 8
        %s836 = scalar_lea.vmem %s9, %s835
        // Predicated region
        $region57: #{tpu_custom_call.1} parent=47 // pred_check
          %p837 = pneg %p211
        $region58: #{tpu_custom_call.1} parent=47 // pred_check_branch
          %839 = sbr.rel (%p837) target = $region60
        $region59: #{tpu_custom_call.1} parent=47 // pred_region
          %s840 = sadd.s32 %s29, %s30
          %s842 = ssub.s32 128, 128
          %843 = vsyncadd %s825, %s842
          %s844 = smul.addr %s840, 128
          %s845 = scalar_lea.hbm %s7, %s844
          %s847 = sshll.u32 %s828, 4
          %s848 = int_to_ptr.vmem [resolvable:$true] %s847
          %850 = dma.vmem_to_hbm [thread:$0]  %s848, 128, %s845, %s825
        $region60: #{tpu_custom_call.1} parent=47 // pred_fallthru
          _
        // Predicated region
        $region61: #{tpu_custom_call.1} parent=47 // pred_check
          %p851 = pneg %p237
        $region62: #{tpu_custom_call.1} parent=47 // pred_check_branch
          %853 = sbr.rel (%p851) target = $region64
        $region63: #{tpu_custom_call.1} parent=47 // pred_region
          _
        $region64: #{tpu_custom_call.1} parent=47 // pred_fallthru
          _
        // Predicated region
        $region65: #{tpu_custom_call.1} parent=47 // pred_check
          %p854 = pneg %p263
        $region66: #{tpu_custom_call.1} parent=47 // pred_check_branch
          %856 = sbr.rel (%p854) target = $region68
        $region67: #{tpu_custom_call.1} parent=47 // pred_region
          _
        $region68: #{tpu_custom_call.1} parent=47 // pred_fallthru
          _
      $region48: #{tpu_custom_call.1} parent=5 // pred_fallthru
        _
      %p857 = scmp.le.s32.totalorder 2, %s20
      // Predicated region
      $region69: #{tpu_custom_call.1} parent=5 // pred_check
        %p858 = pneg %p857
      $region70: #{tpu_custom_call.1} parent=5 // pred_check_branch
        %860 = sbr.rel (%p858) target = $region72
      $region71: #{tpu_custom_call.1} parent=5 // pred_region
        %s861 = ssub.s32 %s20, 2
        // Predicated region
        $region73: #{tpu_custom_call.1} parent=71 // pred_check
          %p862 = pneg %p217
        $region74: #{tpu_custom_call.1} parent=71 // pred_check_branch
          %864 = sbr.rel (%p862) target = $region76
        $region75: #{tpu_custom_call.1} parent=71 // pred_region
          %s865 = sand.u32 %s202, 1
          %s866 = scalar_lea.sflag [#allocation7], %s865
          %s867 = sand.u32 %s202, 1
          %s868 = smul.addr %s867, 8
          %s869 = scalar_lea.vmem [#allocation6], %s868
          %870 = dma.done %s866, 128
        $region76: #{tpu_custom_call.1} parent=71 // pred_fallthru
          _
        // Predicated region
        $region77: #{tpu_custom_call.1} parent=71 // pred_check
          %p871 = pneg %p243
        $region78: #{tpu_custom_call.1} parent=71 // pred_check_branch
          %873 = sbr.rel (%p871) target = $region80
        $region79: #{tpu_custom_call.1} parent=71 // pred_region
          %p874 = scmp.lt.s32.totalorder %s31, 1
          %s875 = scalar_select %p874, %s31, 1
          %s876 = smul.addr %s875, 8
          %s877 = scalar_lea.vmem %s8, %s876
        $region80: #{tpu_custom_call.1} parent=71 // pred_fallthru
          _
        // Predicated region
        $region81: #{tpu_custom_call.1} parent=71 // pred_check
          %p878 = pneg %p269
        $region82: #{tpu_custom_call.1} parent=71 // pred_check_branch
          %880 = sbr.rel (%p878) target = $region84
        $region83: #{tpu_custom_call.1} parent=71 // pred_region
          %p881 = scmp.lt.s32.totalorder %s31, 1
          %s882 = scalar_select %p881, %s31, 1
          %s883 = smul.addr %s882, 8
          %s884 = scalar_lea.vmem %s9, %s883
        $region84: #{tpu_custom_call.1} parent=71 // pred_fallthru
          _
      $region72: #{tpu_custom_call.1} parent=5 // pred_fallthru
        _
    $region6: #{tpu_custom_call.1} parent=1 // loop_footer
      %s24 = sadd.s32 1, %s20
    $region7: #{tpu_custom_call.1} parent=1 // loop_footer_branch
      %19 = sbr.rel target = $region3
    $region8: #{tpu_custom_call.1} parent=1 // loop_exit
      _
    %885 = vsyncpa [#allocation7], 1
    %s886 = scalar_lea.sflag [#allocation7], 1
    %887 = vsyncpa %s886, 1

</llo_original>
